<compile_context>
chip_gen: v7x
topology: tpu7x:2x2x1
jax: 0.10.0
libtpu: 0.0.40
codegen_flags: <defaults>
</compile_context>

<pallas_src>
import math

import jax
import jax.numpy as jnp
from jax import lax
from jax.experimental import pallas as pl
from jax.experimental.pallas import tpu as pltpu


def _largest_divisor(n, cap, multiple=1):
    """Largest t <= cap with n % t == 0 and t % multiple == 0 (None if none)."""
    for t in range(min(n, cap), 0, -1):
        if n % t == 0 and t % multiple == 0:
            return t
    return None


def _pick_tiles(B, H, target_m=128):
    """Row tile TH (divides H) and batch group NB (divides B), NB*TH ~= target_m."""
    if H <= target_m:
        TH = H
    else:
        # Prefer a multiple-of-8 row tile; otherwise fall back to full height
        # (keeps the (8, 128) block-shape constraint satisfied either way).
        TH = _largest_divisor(H, target_m, 8) or H
    NB = _largest_divisor(B, max(1, target_m // TH)) or 1
    return NB, TH


def _pad_cout(W, Cout):
    """Smallest Cout' >= Cout with (W*Cout') % 128 == 0, unless too wasteful."""
    step = 128 // math.gcd(W, 128)
    cout_p = -(-Cout // step) * step
    if cout_p > max(2 * Cout, Cout + 8):
        return Cout  # padding would more than double the work; accept masked stores
    return cout_p


def _band_weights(w, W, cout_p):
    """(3,3,Cin,Cout) HWIO -> (3*W*Cin, W*cout_p) banded conv weight.

    band[ky*W*Cin + wy*Cin + ci, wo*cout_p + co] = w[ky, wy-wo+1, ci, co] when
    |wy - wo| <= 1, else 0.  A single (rows, 3*W*Cin) @ band matmul applies all
    9 taps + the Cin contraction with SAME column padding folded in, and its
    output columns are already lane-dense in (w, cout) order.
    """
    K, _, Cin, Cout = w.shape
    if cout_p != Cout:
        w = jnp.pad(w, ((0, 0), (0, 0), (0, 0), (0, cout_p - Cout)))
    wy = jnp.arange(W)[:, None, None]
    wo = jnp.arange(W)[None, :, None]
    dx = jnp.arange(3)[None, None, :]
    sel = (wy == wo + dx - 1).astype(w.dtype)           # (W, W, 3)
    band = jnp.einsum('ywd,kdic->kyiwc', sel, w)        # (3, W, Cin, W, cout_p)
    return band.reshape(K * W * Cin, W * cout_p)


def _ang_embed_kernel(x_ref, y_ref, w_ref, o_ref, slab_ref):
    # x_ref:    (NB, TH, WCp)        lane-dense modulated-input tile
    # y_ref:    (NB, H, WCin)        full-height conditioning rows for NB batches
    # w_ref:    (3*WCin + 1, 2*WCp)  fused banded conv weights + bias row
    # o_ref:    (NB, TH, WCp)
    # slab_ref: (NB*TH, 3*WCin + 1)  row-banded y slab (+ constant-1 bias column)
    i = pl.program_id(1)
    n_tiles = pl.num_programs(1)
    NB, TH, WCp = x_ref.shape
    WCin = y_ref.shape[2]
    M = NB * TH
    r0 = pl.multiple_of(i * TH, TH)

    # Constant-one column -> the matmul adds the fused bias row of w_ref.
    slab_ref[pl.ds(0, M), pl.ds(3 * WCin, 1)] = jnp.ones((M, 1), slab_ref.dtype)

    zero_row = jnp.zeros((1, WCin), slab_ref.dtype)
    for nb in range(NB):                    # static unroll over grouped batches
        base = nb * TH

        # center band (ky=1): y rows r0 .. r0+TH-1 (always in range)
        slab_ref[pl.ds(base, TH), pl.ds(WCin, WCin)] = (
            y_ref[nb, pl.ds(r0, TH), :].astype(slab_ref.dtype))

        # upper band (ky=0): y rows r0-1 .. r0+TH-2 (row -1 is zero padding)
        @pl.when(i > 0)
        def _(nb=nb, base=base):
            slab_ref[pl.ds(base, TH), pl.ds(0, WCin)] = (
                y_ref[nb, pl.ds(r0 - 1, TH), :].astype(slab_ref.dtype))

        @pl.when(i == 0)
        def _(nb=nb, base=base):
            slab_ref[pl.ds(base, 1), pl.ds(0, WCin)] = zero_row
            if TH > 1:
                slab_ref[pl.ds(base + 1, TH - 1), pl.ds(0, WCin)] = (
                    y_ref[nb, pl.ds(0, TH - 1), :].astype(slab_ref.dtype))

        # lower band (ky=2): y rows r0+1 .. r0+TH (row H is zero padding)
        @pl.when(i < n_tiles - 1)
        def _(nb=nb, base=base):
            slab_ref[pl.ds(base, TH), pl.ds(2 * WCin, WCin)] = (
                y_ref[nb, pl.ds(r0 + 1, TH), :].astype(slab_ref.dtype))

        @pl.when(i == n_tiles - 1)
        def _(nb=nb, base=base):
            if TH > 1:
                slab_ref[pl.ds(base, TH - 1), pl.ds(2 * WCin, WCin)] = (
                    y_ref[nb, pl.ds(r0 + 1, TH - 1), :].astype(slab_ref.dtype))
            slab_ref[pl.ds(base + TH - 1, 1), pl.ds(2 * WCin, WCin)] = zero_row

    # One banded matmul computes gamma|beta (bias folded in) for the whole tile.
    acc = jnp.dot(slab_ref[...], w_ref[...],
                  preferred_element_type=jnp.float32)        # (M, 2*WCp)
    gamma = acc[:, :WCp]
    beta = acc[:, WCp:]
    x = x_ref[...].reshape(M, WCp).astype(jnp.float32)
    out = x * gamma + beta                                   # f32 modulate (v5e VPU)
    o_ref[...] = out.astype(o_ref.dtype).reshape(NB, TH, WCp)


def ang_embed(in_x, in_y, w1, b1, w2, b2, *, compute_dtype=jnp.float32):
    """in_x: (B,H,W,Cout), in_y: (B,H,W,Cin); w*: (3,3,Cin,Cout); b*: (1,Cout).

    Returns in_x * (conv1(in_y)) + conv2(in_y) with 3x3 SAME convs, stride 1.
    Use compute_dtype=jnp.bfloat16 on v6e/v7x for bf16 MXU operands (accumulation
    stays f32; re-validate tolerance if used).
    """
    B, H, W, Cout = in_x.shape
    Cin = in_y.shape[-1]
    cout_p = _pad_cout(W, Cout)

    NB, TH = _pick_tiles(B, H)
    n_tiles = H // TH
    WCp = W * cout_p
    WCin = W * Cin
    KB = 3 * WCin + 1                       # banded K + bias (constant-1) column
    M = NB * TH

    # Lane-dense 2-D views (free reshapes of contiguous channels-last arrays).
    if cout_p != Cout:
        in_x = jnp.pad(in_x, ((0, 0), (0, 0), (0, 0), (0, cout_p - Cout)))
    x2 = in_x.reshape(B, H, WCp)
    y2 = in_y.reshape(B, H, WCin)

    # Fused gamma|beta band weight with the bias folded in as the last K row.
    def _bias_cols(b):
        b = b.reshape(1, Cout)
        if cout_p != Cout:
            b = jnp.pad(b, ((0, 0), (0, cout_p - Cout)))
        return jnp.tile(b, (1, W))                           # (1, WCp), (w, co) order

    wband = jnp.concatenate([_band_weights(w1, W, cout_p),
                             _band_weights(w2, W, cout_p)], axis=-1)   # (3*WCin, 2*WCp)
    bias_row = jnp.concatenate([_bias_cols(b1), _bias_cols(b2)], axis=-1)  # (1, 2*WCp)
    wfused = jnp.concatenate([wband, bias_row], axis=0).astype(compute_dtype)

    # VMEM budget derived from the actual blocks, capped by chip VMEM capacity.
    xbytes = in_x.dtype.itemsize
    ybytes = in_y.dtype.itemsize
    cbytes = jnp.dtype(compute_dtype).itemsize
    block_bytes = (2 * (NB * TH * WCp * xbytes)          # x block (double-buffered)
                   + 2 * (NB * H * WCin * ybytes)        # y block (double-buffered)
                   + 2 * (NB * TH * WCp * xbytes)        # out block (double-buffered)
                   + KB * 2 * WCp * cbytes               # fused weight (single-buffered)
                   + M * KB * cbytes)                    # slab scratch
    try:
        vmem_cap = int(pltpu.get_tpu_info().vmem_capacity_bytes)
    except Exception:
        vmem_cap = 64 * 1024 * 1024                      # conservative: v7x per-TC VMEM
    vmem_limit = int(min(max(2 * block_bytes, 16 * 1024 * 1024),
                         int(0.75 * vmem_cap)))

    # Cost estimate reflecting the actual banded-matmul MACs (not dense-conv MACs).
    cost = pl.CostEstimate(
        flops=2 * B * H * KB * (2 * WCp) + 2 * B * H * WCp,
        transcendentals=0,
        bytes_accessed=(2 * B * H * WCp + B * H * WCin) * xbytes + wfused.size * cbytes,
    )

    out2 = pl.pallas_call(
        _ang_embed_kernel,
        out_shape=jax.ShapeDtypeStruct((B, H, WCp), in_x.dtype),
        grid_spec=pltpu.PrefetchScalarGridSpec(
            num_scalar_prefetch=0,
            grid=(B // NB, n_tiles),
            in_specs=[
                pl.BlockSpec((NB, TH, WCp), lambda g, i: (g, i, 0)),
                pl.BlockSpec((NB, H, WCin), lambda g, i: (g, 0, 0)),
                # grid-invariant fused weight: single-buffered to halve its VMEM
                pl.BlockSpec((KB, 2 * WCp), lambda g, i: (0, 0),
                             pipeline_mode=pl.Buffered(1)),
            ],
            out_specs=pl.BlockSpec((NB, TH, WCp), lambda g, i: (g, i, 0)),
            scratch_shapes=[pltpu.VMEM((M, KB), compute_dtype)],
        ),
        compiler_params=pltpu.CompilerParams(
            dimension_semantics=("parallel", "parallel"),
            vmem_limit_bytes=vmem_limit,
        ),
        cost_estimate=cost,
    )(x2, y2, wfused)

    out = out2.reshape(B, H, W, cout_p)
    if cout_p != Cout:
        out = out[..., :Cout]
    return out


def _reference(in_x, in_y, w1, b1, w2, b2):
    dn = lax.conv_dimension_numbers(in_y.shape, w1.shape, ('NHWC', 'HWIO', 'NHWC'))
    gamma = lax.conv_general_dilated(in_y, w1, (1, 1), 'SAME',
                                     dimension_numbers=dn) + b1
    beta = lax.conv_general_dilated(in_y, w2, (1, 1), 'SAME',
                                    dimension_numbers=dn) + b2
    return in_x * gamma + beta


if __name__ == "__main__":
    B, H, W = 2, 16, 16
    in_num, out_num = 4, 8   # Cin for the convs, Cout (= channels of in_x)

    key = jax.random.PRNGKey(0)
    kx, ky, kw1, kb1, kw2, kb2 = jax.random.split(key, 6)

    # NHWC inputs (see layout comment at top).
    in_x = jax.random.normal(kx, (B, H, W, out_num), dtype=jnp.float32)
    in_y = jax.random.normal(ky, (B, H, W, in_num), dtype=jnp.float32)

    # Deterministic synthetic parameters (HWIO weights, (1, Cout) biases).
    w1 = 0.1 * jax.random.normal(kw1, (3, 3, in_num, out_num), dtype=jnp.float32)
    b1 = 0.1 * jax.random.normal(kb1, (1, out_num), dtype=jnp.float32)
    w2 = 0.1 * jax.random.normal(kw2, (3, 3, in_num, out_num), dtype=jnp.float32)
    b2 = 0.1 * jax.random.normal(kb2, (1, out_num), dtype=jnp.float32)

    out = jax.jit(ang_embed)(in_x, in_y, w1, b1, w2, b2)
    out = jax.block_until_ready(out)

    ref = _reference(in_x, in_y, w1, b1, w2, b2)
    assert out.shape == (B, H, W, out_num)
    assert jnp.max(jnp.abs(out - ref)) < 1e-4

    print("KERNEL_OK")
</pallas_src>

<mosaic_0001>
module attributes {stable_mosaic.version = 11 : i64} {
  func.func @_ang_embed_kernel(%arg0: i32, %arg1: i32, %arg2: memref<2x16x128xf32, #tpu.memory_space<vmem>>, %arg3: memref<2x16x64xf32, #tpu.memory_space<vmem>>, %arg4: memref<193x256xf32, #tpu.memory_space<vmem>>, %arg5: memref<2x16x128xf32, #tpu.memory_space<vmem>>, %arg6: memref<32x193xf32, #tpu.memory_space<vmem>>) attributes {dimension_semantics = [#tpu.dimension_semantics<parallel>, #tpu.dimension_semantics<parallel>], iteration_bounds = array<i64: 1, 1>, scalar_prefetch = 0 : i64, scratch_operands = 1 : i64, tpu.core_type = #tpu.core_type<tc>, window_params = [{transform_indices = @transform_0, window_bounds = array<i64: 2, 16, 128>}, {transform_indices = @transform_1, window_bounds = array<i64: 2, 16, 64>}, {pipeline_mode = #tpu.pipeline_mode<synchronous>, transform_indices = @transform_2, window_bounds = array<i64: 193, 256>}, {transform_indices = @transform_3, window_bounds = array<i64: 2, 16, 128>}]} {
    %c16_i32 = arith.constant 16 : i32
    %0 = arith.muli %arg1, %c16_i32 : i32
    %1 = tpu.assume_multiple %0, 16 : i32
    %cst = arith.constant 1.000000e+00 : f32
    %2 = vector.broadcast %cst : f32 to vector<32x1xf32>
    %c0 = arith.constant 0 : index
    %c192 = arith.constant 192 : index
    %3 = vector.load %arg6[%c0, %c192] : memref<32x193xf32, #tpu.memory_space<vmem>>, vector<32x1xf32>
    tpu.vector_store %arg6[%c0, %c192], %2 {strides = array<i32>} : memref<32x193xf32, #tpu.memory_space<vmem>>, vector<32x1xf32>,
    %cst_0 = arith.constant 0.000000e+00 : f32
    %4 = vector.broadcast %cst_0 : f32 to vector<1x64xf32>
    %c0_1 = arith.constant 0 : index
    %5 = arith.index_cast %1 : i32 to index
    %c0_2 = arith.constant 0 : index
    %6 = vector.load %arg3[%c0_1, %5, %c0_2] : memref<2x16x64xf32, #tpu.memory_space<vmem>>, vector<1x16x64xf32>
    %7 = vector.shape_cast %6 : vector<1x16x64xf32> to vector<16x64xf32>
    %c0_3 = arith.constant 0 : index
    %c64 = arith.constant 64 : index
    %8 = vector.load %arg6[%c0_3, %c64] : memref<32x193xf32, #tpu.memory_space<vmem>>, vector<16x64xf32>
    tpu.vector_store %arg6[%c0_3, %c64], %7 {strides = array<i32>} : memref<32x193xf32, #tpu.memory_space<vmem>>, vector<16x64xf32>,
    %c0_i32 = arith.constant 0 : i32
    %9 = arith.cmpi sgt, %arg1, %c0_i32 : i32
    %10 = arith.extui %9 : i1 to i32
    %c0_i32_4 = arith.constant 0 : i32
    %11 = arith.cmpi ne, %10, %c0_i32_4 : i32
    scf.if %11 {
      %c1_i32 = arith.constant 1 : i32
      %48 = arith.subi %1, %c1_i32 : i32
      %c0_32 = arith.constant 0 : index
      %49 = arith.index_cast %48 : i32 to index
      %c0_33 = arith.constant 0 : index
      %50 = vector.load %arg3[%c0_32, %49, %c0_33] : memref<2x16x64xf32, #tpu.memory_space<vmem>>, vector<1x16x64xf32>
      %51 = vector.shape_cast %50 : vector<1x16x64xf32> to vector<16x64xf32>
      %c0_34 = arith.constant 0 : index
      %c0_35 = arith.constant 0 : index
      %52 = vector.load %arg6[%c0_34, %c0_35] : memref<32x193xf32, #tpu.memory_space<vmem>>, vector<16x64xf32>
      tpu.vector_store %arg6[%c0_34, %c0_35], %51 {strides = array<i32>} : memref<32x193xf32, #tpu.memory_space<vmem>>, vector<16x64xf32>,
    } else {
    }
    %c0_i32_5 = arith.constant 0 : i32
    %12 = arith.cmpi eq, %arg1, %c0_i32_5 : i32
    %13 = arith.extui %12 : i1 to i32
    %c0_i32_6 = arith.constant 0 : i32
    %14 = arith.cmpi ne, %13, %c0_i32_6 : i32
    scf.if %14 {
      %c0_32 = arith.constant 0 : index
      %c0_33 = arith.constant 0 : index
      %48 = vector.load %arg6[%c0_32, %c0_33] : memref<32x193xf32, #tpu.memory_space<vmem>>, vector<1x64xf32>
      tpu.vector_store %arg6[%c0_32, %c0_33], %4 {strides = array<i32>} : memref<32x193xf32, #tpu.memory_space<vmem>>, vector<1x64xf32>,
      %c0_34 = arith.constant 0 : index
      %c0_35 = arith.constant 0 : index
      %c0_36 = arith.constant 0 : index
      %49 = vector.load %arg3[%c0_34, %c0_35, %c0_36] : memref<2x16x64xf32, #tpu.memory_space<vmem>>, vector<1x15x64xf32>
      %50 = vector.shape_cast %49 : vector<1x15x64xf32> to vector<15x64xf32>
      %c1_37 = arith.constant 1 : index
      %c0_38 = arith.constant 0 : index
      %51 = vector.load %arg6[%c1_37, %c0_38] : memref<32x193xf32, #tpu.memory_space<vmem>>, vector<15x64xf32>
      tpu.vector_store %arg6[%c1_37, %c0_38], %50 {strides = array<i32>} : memref<32x193xf32, #tpu.memory_space<vmem>>, vector<15x64xf32>,
    } else {
    }
    %c0_i32_7 = arith.constant 0 : i32
    %15 = arith.cmpi slt, %arg1, %c0_i32_7 : i32
    %16 = arith.extui %15 : i1 to i32
    %c0_i32_8 = arith.constant 0 : i32
    %17 = arith.cmpi ne, %16, %c0_i32_8 : i32
    scf.if %17 {
      %c1_i32 = arith.constant 1 : i32
      %48 = arith.addi %1, %c1_i32 : i32
      %c0_32 = arith.constant 0 : index
      %49 = arith.index_cast %48 : i32 to index
      %c0_33 = arith.constant 0 : index
      %50 = vector.load %arg3[%c0_32, %49, %c0_33] : memref<2x16x64xf32, #tpu.memory_space<vmem>>, vector<1x16x64xf32>
      %51 = vector.shape_cast %50 : vector<1x16x64xf32> to vector<16x64xf32>
      %c0_34 = arith.constant 0 : index
      %c128 = arith.constant 128 : index
      %52 = vector.load %arg6[%c0_34, %c128] : memref<32x193xf32, #tpu.memory_space<vmem>>, vector<16x64xf32>
      tpu.vector_store %arg6[%c0_34, %c128], %51 {strides = array<i32>} : memref<32x193xf32, #tpu.memory_space<vmem>>, vector<16x64xf32>,
    } else {
    }
    %c0_i32_9 = arith.constant 0 : i32
    %18 = arith.cmpi eq, %arg1, %c0_i32_9 : i32
    %19 = arith.extui %18 : i1 to i32
    %c0_i32_10 = arith.constant 0 : i32
    %20 = arith.cmpi ne, %19, %c0_i32_10 : i32
    scf.if %20 {
      %c1_i32 = arith.constant 1 : i32
      %48 = arith.addi %1, %c1_i32 : i32
      %c0_32 = arith.constant 0 : index
      %49 = arith.index_cast %48 : i32 to index
      %c0_33 = arith.constant 0 : index
      %50 = vector.load %arg3[%c0_32, %49, %c0_33] : memref<2x16x64xf32, #tpu.memory_space<vmem>>, vector<1x15x64xf32>
      %51 = vector.shape_cast %50 : vector<1x15x64xf32> to vector<15x64xf32>
      %c0_34 = arith.constant 0 : index
      %c128 = arith.constant 128 : index
      %52 = vector.load %arg6[%c0_34, %c128] : memref<32x193xf32, #tpu.memory_space<vmem>>, vector<15x64xf32>
      tpu.vector_store %arg6[%c0_34, %c128], %51 {strides = array<i32>} : memref<32x193xf32, #tpu.memory_space<vmem>>, vector<15x64xf32>,
      %c15 = arith.constant 15 : index
      %c128_35 = arith.constant 128 : index
      %53 = vector.load %arg6[%c15, %c128_35] : memref<32x193xf32, #tpu.memory_space<vmem>>, vector<1x64xf32>
      tpu.vector_store %arg6[%c15, %c128_35], %4 {strides = array<i32>} : memref<32x193xf32, #tpu.memory_space<vmem>>, vector<1x64xf32>,
    } else {
    }
    %c1 = arith.constant 1 : index
    %21 = arith.index_cast %1 : i32 to index
    %c0_11 = arith.constant 0 : index
    %22 = vector.load %arg3[%c1, %21, %c0_11] : memref<2x16x64xf32, #tpu.memory_space<vmem>>, vector<1x16x64xf32>
    %23 = vector.shape_cast %22 : vector<1x16x64xf32> to vector<16x64xf32>
    %c16 = arith.constant 16 : index
    %c64_12 = arith.constant 64 : index
    %24 = vector.load %arg6[%c16, %c64_12] : memref<32x193xf32, #tpu.memory_space<vmem>>, vector<16x64xf32>
    tpu.vector_store %arg6[%c16, %c64_12], %23 {strides = array<i32>} : memref<32x193xf32, #tpu.memory_space<vmem>>, vector<16x64xf32>,
    %c0_i32_13 = arith.constant 0 : i32
    %25 = arith.cmpi sgt, %arg1, %c0_i32_13 : i32
    %26 = arith.extui %25 : i1 to i32
    %c0_i32_14 = arith.constant 0 : i32
    %27 = arith.cmpi ne, %26, %c0_i32_14 : i32
    scf.if %27 {
      %c1_i32 = arith.constant 1 : i32
      %48 = arith.subi %1, %c1_i32 : i32
      %c1_32 = arith.constant 1 : index
      %49 = arith.index_cast %48 : i32 to index
      %c0_33 = arith.constant 0 : index
      %50 = vector.load %arg3[%c1_32, %49, %c0_33] : memref<2x16x64xf32, #tpu.memory_space<vmem>>, vector<1x16x64xf32>
      %51 = vector.shape_cast %50 : vector<1x16x64xf32> to vector<16x64xf32>
      %c16_34 = arith.constant 16 : index
      %c0_35 = arith.constant 0 : index
      %52 = vector.load %arg6[%c16_34, %c0_35] : memref<32x193xf32, #tpu.memory_space<vmem>>, vector<16x64xf32>
      tpu.vector_store %arg6[%c16_34, %c0_35], %51 {strides = array<i32>} : memref<32x193xf32, #tpu.memory_space<vmem>>, vector<16x64xf32>,
    } else {
    }
    %c0_i32_15 = arith.constant 0 : i32
    %28 = arith.cmpi eq, %arg1, %c0_i32_15 : i32
    %29 = arith.extui %28 : i1 to i32
    %c0_i32_16 = arith.constant 0 : i32
    %30 = arith.cmpi ne, %29, %c0_i32_16 : i32
    scf.if %30 {
      %c16_32 = arith.constant 16 : index
      %c0_33 = arith.constant 0 : index
      %48 = vector.load %arg6[%c16_32, %c0_33] : memref<32x193xf32, #tpu.memory_space<vmem>>, vector<1x64xf32>
      tpu.vector_store %arg6[%c16_32, %c0_33], %4 {strides = array<i32>} : memref<32x193xf32, #tpu.memory_space<vmem>>, vector<1x64xf32>,
      %c1_34 = arith.constant 1 : index
      %c0_35 = arith.constant 0 : index
      %c0_36 = arith.constant 0 : index
      %49 = vector.load %arg3[%c1_34, %c0_35, %c0_36] : memref<2x16x64xf32, #tpu.memory_space<vmem>>, vector<1x15x64xf32>
      %50 = vector.shape_cast %49 : vector<1x15x64xf32> to vector<15x64xf32>
      %c17 = arith.constant 17 : index
      %c0_37 = arith.constant 0 : index
      %51 = vector.load %arg6[%c17, %c0_37] : memref<32x193xf32, #tpu.memory_space<vmem>>, vector<15x64xf32>
      tpu.vector_store %arg6[%c17, %c0_37], %50 {strides = array<i32>} : memref<32x193xf32, #tpu.memory_space<vmem>>, vector<15x64xf32>,
    } else {
    }
    %c0_i32_17 = arith.constant 0 : i32
    %31 = arith.cmpi slt, %arg1, %c0_i32_17 : i32
    %32 = arith.extui %31 : i1 to i32
    %c0_i32_18 = arith.constant 0 : i32
    %33 = arith.cmpi ne, %32, %c0_i32_18 : i32
    scf.if %33 {
      %c1_i32 = arith.constant 1 : i32
      %48 = arith.addi %1, %c1_i32 : i32
      %c1_32 = arith.constant 1 : index
      %49 = arith.index_cast %48 : i32 to index
      %c0_33 = arith.constant 0 : index
      %50 = vector.load %arg3[%c1_32, %49, %c0_33] : memref<2x16x64xf32, #tpu.memory_space<vmem>>, vector<1x16x64xf32>
      %51 = vector.shape_cast %50 : vector<1x16x64xf32> to vector<16x64xf32>
      %c16_34 = arith.constant 16 : index
      %c128 = arith.constant 128 : index
      %52 = vector.load %arg6[%c16_34, %c128] : memref<32x193xf32, #tpu.memory_space<vmem>>, vector<16x64xf32>
      tpu.vector_store %arg6[%c16_34, %c128], %51 {strides = array<i32>} : memref<32x193xf32, #tpu.memory_space<vmem>>, vector<16x64xf32>,
    } else {
    }
    %c0_i32_19 = arith.constant 0 : i32
    %34 = arith.cmpi eq, %arg1, %c0_i32_19 : i32
    %35 = arith.extui %34 : i1 to i32
    %c0_i32_20 = arith.constant 0 : i32
    %36 = arith.cmpi ne, %35, %c0_i32_20 : i32
    scf.if %36 {
      %c1_i32 = arith.constant 1 : i32
      %48 = arith.addi %1, %c1_i32 : i32
      %c1_32 = arith.constant 1 : index
      %49 = arith.index_cast %48 : i32 to index
      %c0_33 = arith.constant 0 : index
      %50 = vector.load %arg3[%c1_32, %49, %c0_33] : memref<2x16x64xf32, #tpu.memory_space<vmem>>, vector<1x15x64xf32>
      %51 = vector.shape_cast %50 : vector<1x15x64xf32> to vector<15x64xf32>
      %c16_34 = arith.constant 16 : index
      %c128 = arith.constant 128 : index
      %52 = vector.load %arg6[%c16_34, %c128] : memref<32x193xf32, #tpu.memory_space<vmem>>, vector<15x64xf32>
      tpu.vector_store %arg6[%c16_34, %c128], %51 {strides = array<i32>} : memref<32x193xf32, #tpu.memory_space<vmem>>, vector<15x64xf32>,
      %c31 = arith.constant 31 : index
      %c128_35 = arith.constant 128 : index
      %53 = vector.load %arg6[%c31, %c128_35] : memref<32x193xf32, #tpu.memory_space<vmem>>, vector<1x64xf32>
      tpu.vector_store %arg6[%c31, %c128_35], %4 {strides = array<i32>} : memref<32x193xf32, #tpu.memory_space<vmem>>, vector<1x64xf32>,
    } else {
    }
    %c0_21 = arith.constant 0 : index
    %c0_22 = arith.constant 0 : index
    %37 = vector.load %arg6[%c0_21, %c0_22] : memref<32x193xf32, #tpu.memory_space<vmem>>, vector<32x193xf32>
    %c0_23 = arith.constant 0 : index
    %c0_24 = arith.constant 0 : index
    %38 = vector.load %arg4[%c0_23, %c0_24] : memref<193x256xf32, #tpu.memory_space<vmem>>, vector<193x256xf32>
    %cst_25 = arith.constant dense<0.000000e+00> : vector<32x256xf32>
    %39 = tpu.matmul %37, %38, %cst_25 {dimension_numbers = #tpu.dot_dimension_numbers<[1], [0], [0], [1], [0, 0, 1, 1], [], []>} : vector<32x193xf32>, vector<193x256xf32>, vector<32x256xf32> -> vector<32x256xf32>
    %40 = vector.extract_strided_slice %39 {offsets = [0, 0], sizes = [32, 128], strides = [1, 1]} : vector<32x256xf32> to vector<32x128xf32>
    %41 = vector.extract_strided_slice %39 {offsets = [0, 128], sizes = [32, 128], strides = [1, 1]} : vector<32x256xf32> to vector<32x128xf32>
    %c0_26 = arith.constant 0 : index
    %c0_27 = arith.constant 0 : index
    %c0_28 = arith.constant 0 : index
    %42 = vector.load %arg2[%c0_26, %c0_27, %c0_28] : memref<2x16x128xf32, #tpu.memory_space<vmem>>, vector<2x16x128xf32>
    %43 = vector.shape_cast %42 : vector<2x16x128xf32> to vector<32x128xf32>
    %44 = arith.mulf %43, %40 : vector<32x128xf32>
    %45 = arith.addf %44, %41 : vector<32x128xf32>
    %46 = vector.shape_cast %45 : vector<32x128xf32> to vector<2x16x128xf32>
    %c0_29 = arith.constant 0 : index
    %c0_30 = arith.constant 0 : index
    %c0_31 = arith.constant 0 : index
    %47 = vector.load %arg5[%c0_29, %c0_30, %c0_31] : memref<2x16x128xf32, #tpu.memory_space<vmem>>, vector<2x16x128xf32>
    tpu.vector_store %arg5[%c0_29, %c0_30, %c0_31], %46 {strides = array<i32>} : memref<2x16x128xf32, #tpu.memory_space<vmem>>, vector<2x16x128xf32>,
    return
  }
  func.func @transform_0(%arg0: i32, %arg1: i32) -> (i32, i32, i32) {
    %c0_i32 = arith.constant 0 : i32
    %c0_i32_0 = arith.constant 0 : i32
    return %arg0, %arg1, %c0_i32 : i32, i32, i32
  }
  func.func @transform_1(%arg0: i32, %arg1: i32) -> (i32, i32, i32) {
    %c0_i32 = arith.constant 0 : i32
    %c0_i32_0 = arith.constant 0 : i32
    %c0_i32_1 = arith.constant 0 : i32
    return %arg0, %c0_i32, %c0_i32_0 : i32, i32, i32
  }
  func.func @transform_2(%arg0: i32, %arg1: i32) -> (i32, i32) {
    %c0_i32 = arith.constant 0 : i32
    %c0_i32_0 = arith.constant 0 : i32
    %c0_i32_1 = arith.constant 0 : i32
    return %c0_i32, %c0_i32_0 : i32, i32
  }
  func.func @transform_3(%arg0: i32, %arg1: i32) -> (i32, i32, i32) {
    %c0_i32 = arith.constant 0 : i32
    %c0_i32_0 = arith.constant 0 : i32
    return %arg0, %arg1, %c0_i32 : i32, i32, i32
  }
}

</mosaic_0001>

<llo_original>
// kernel: ang_embed.1
$region0: #{ang_embed.1}
  #allocation0 [shape = 'u32[]', space=smem, size = 0x4, offset = 0x4, fixed_abs, tag = 'smem constant byte address 0x4 - core index']
  #allocation1 [shape = 'u32[144,128]{1,0:T(1,128)}', space=vmem, size = 0x12000, scoped, tag = 'internal scratch']
  #allocation2 [shape = 'f32[32,193]{1,0:T(8,128)}', space=vmem, size = 0x8000, scoped, tag = 'scratch operand']
  %s0 = inlined_call_operand.vmem [shape: f32[2,16,128], index: 0, kind: input, shape index: {}]
  %s1 = inlined_call_operand.vmem [shape: f32[2,16,64], index: 1, kind: input, shape index: {}]
  %s2 = inlined_call_operand.vmem [shape: f32[193,256], index: 2, kind: input, shape index: {}]
  %s3 = inlined_call_operand.vmem [shape: f32[2,16,128], index: 3, kind: output, shape index: {}]
  %s4 = sld [smem:[#allocation0]]
  $region54: #{ang_embed.1} parent=0
    _
  %s6 = ssub.s32 1, %s4
  %s7 = scalar_select 0, %s6, %s4
  // Predicated region
  $region2: #{ang_embed.1} parent=0 // pred_check
    _
  $region3: #{ang_embed.1} parent=0 // pred_check_branch
    %9 = sbr.rel (0) target = $region5
  $region4: #{ang_embed.1} parent=0 // pred_region
    _
  $region5: #{ang_embed.1} parent=0 // pred_fallthru
    _
  // Predicated region
  $region6: #{ang_embed.1} parent=0 // pred_check
    _
  $region7: #{ang_embed.1} parent=0 // pred_check_branch
    %11 = sbr.rel (0) target = $region9
  $region8: #{ang_embed.1} parent=0 // pred_region
    _
  $region9: #{ang_embed.1} parent=0 // pred_fallthru
    _
  // Predicated region
  $region10: #{ang_embed.1} parent=0 // pred_check
    _
  $region11: #{ang_embed.1} parent=0 // pred_check_branch
    %13 = sbr.rel (0) target = $region13
  $region12: #{ang_embed.1} parent=0 // pred_region
    _
  $region13: #{ang_embed.1} parent=0 // pred_fallthru
    _
  %s14 = smul.u32 0, 16
  %vm15 = vcmask 531968
  %16 = vst.msk [vmem:[#allocation2 + $0x8] sm:$0xff] %vm15, 1.0
  %17 = vst.msk [vmem:[#allocation2 + $0x18] sm:$0xff] %vm15, 1.0
  %18 = vst.msk [vmem:[#allocation2 + $0x28] sm:$0xff] %vm15, 1.0
  %19 = vst.msk [vmem:[#allocation2 + $0x38] sm:$0xff] %vm15, 1.0
  %s20 = scalar_lea.vmem %s1, %s14
  %v21 = vld [vmem:[%s20] sm:$0xff]
  %v22 = vld [vmem:[%s20 + $0x8] sm:$0xff]
  %25 = vrot.lane.b32.xlu0 %v21, 64
  %v26 = vpop.permute.xlu0 %25
  %27 = vrot.lane.b32.xlu0 %v22, 64
  %v28 = vpop.permute.xlu0 %27
  %vm31 = vcmask 1048064
  %32 = vst.msk [vmem:[#allocation2] sm:$0xff] %vm31, %v26
  %33 = vst.msk [vmem:[#allocation2 + $0x10] sm:$0xff] %vm31, %v28
  %p34 = scmp.gt.s32.totalorder 0, 0
  // Predicated region
  $region14: #{ang_embed.1} parent=0 // pred_check
    %p35 = pneg %p34
  $region15: #{ang_embed.1} parent=0 // pred_check_branch
    %37 = sbr.rel (%p35) target = $region17
  $region16: #{ang_embed.1} parent=0 // pred_region
    %s38 = ssub.s32 %s14, 1
    %s39 = scalar_lea.vmem %s1, %s38
    %v40 = vld [vmem:[%s39] sm:$0xff]
    %v41 = vld [vmem:[%s39 + $0x8] sm:$0xff]
    %vm42 = vcmask 523264
    %43 = vst.msk [vmem:[#allocation2] sm:$0xff] %vm42, %v40
    %44 = vst.msk [vmem:[#allocation2 + $0x10] sm:$0xff] %vm42, %v41
  $region17: #{ang_embed.1} parent=0 // pred_fallthru
    _
  %p45 = scmp.eq.s32.totalorder 0, 0
  // Predicated region
  $region18: #{ang_embed.1} parent=0 // pred_check
    %p46 = pneg %p45
  $region19: #{ang_embed.1} parent=0 // pred_check_branch
    %48 = sbr.rel (%p46) target = $region21
  $region20: #{ang_embed.1} parent=0 // pred_region
    %vm49 = vcmask 516096
    %50 = vst.msk [vmem:[#allocation2] sm:$0x1] %vm49, 0.0
    %v51 = vld [vmem:[%s1] sm:$0xff]
    %v52 = vld [vmem:[%s1 + $0x8] sm:$0x7f]
    %vm55 = vcmask 1040384
    %v56 = vrot.slane %v51, 7
    %v57 = vrot.slane %v52, 7
    %v58 = vsel %vm55, %v56, %v57
    %vm61 = vcmask 523265
    %62 = vst.msk [vmem:[#allocation2] sm:$0xfe] %vm61, %v56
    %vm63 = vcmask 523264
    %64 = vst.msk [vmem:[#allocation2 + $0x10] sm:$0xff] %vm63, %v58
  $region21: #{ang_embed.1} parent=0 // pred_fallthru
    _
  %p65 = scmp.lt.s32.totalorder 0, 0
  // Predicated region
  $region22: #{ang_embed.1} parent=0 // pred_check
    %p66 = pneg %p65
  $region23: #{ang_embed.1} parent=0 // pred_check_branch
    %68 = sbr.rel (%p66) target = $region25
  $region24: #{ang_embed.1} parent=0 // pred_region
    %s69 = sadd.s32 %s14, 1
    %s70 = scalar_lea.vmem %s1, %s69
    %v71 = vld [vmem:[%s70] sm:$0xff]
    %v72 = vld [vmem:[%s70 + $0x8] sm:$0xff]
    %vm73 = vcmask 523264
    %74 = vst.msk [vmem:[#allocation2 + $0x8] sm:$0xff] %vm73, %v71
    %75 = vst.msk [vmem:[#allocation2 + $0x18] sm:$0xff] %vm73, %v72
  $region25: #{ang_embed.1} parent=0 // pred_fallthru
    _
  // Predicated region
  $region26: #{ang_embed.1} parent=0 // pred_check
    %p76 = pneg %p45
  $region27: #{ang_embed.1} parent=0 // pred_check_branch
    %78 = sbr.rel (%p76) target = $region29
  $region28: #{ang_embed.1} parent=0 // pred_region
    %s79 = sadd.s32 %s14, 1
    %s80 = scalar_lea.vmem %s1, %s79
    %v81 = vld [vmem:[%s80] sm:$0xff]
    %v82 = vld [vmem:[%s80 + $0x8] sm:$0x7f]
    %vm83 = vcmask 523264
    %84 = vst.msk [vmem:[#allocation2 + $0x8] sm:$0xff] %vm83, %v81
    %vm85 = vcmask 522240
    %86 = vst.msk [vmem:[#allocation2 + $0x18] sm:$0x7f] %vm85, %v82
    %vm87 = vcmask 516096
    %88 = vst.msk [vmem:[#allocation2 + $0x1f] sm:$0x1] %vm87, 0.0
  $region29: #{ang_embed.1} parent=0 // pred_fallthru
    _
  %s89 = sadd.s32 %s14, 16
  %s90 = scalar_lea.vmem %s1, %s89
  %v91 = vld [vmem:[%s90] sm:$0xff]
  %v92 = vld [vmem:[%s90 + $0x8] sm:$0xff]
  %95 = vrot.lane.b32.xlu0 %v91, 64
  %v96 = vpop.permute.xlu0 %95
  %97 = vrot.lane.b32.xlu0 %v92, 64
  %v98 = vpop.permute.xlu0 %97
  %101 = vst.msk [vmem:[#allocation2 + $0x20] sm:$0xff] %vm31, %v96
  %102 = vst.msk [vmem:[#allocation2 + $0x30] sm:$0xff] %vm31, %v98
  // Predicated region
  $region30: #{ang_embed.1} parent=0 // pred_check
    %p103 = pneg %p34
  $region31: #{ang_embed.1} parent=0 // pred_check_branch
    %105 = sbr.rel (%p103) target = $region33
  $region32: #{ang_embed.1} parent=0 // pred_region
    %s106 = ssub.s32 %s14, 1
    %s107 = sadd.s32 %s106, 16
    %s108 = scalar_lea.vmem %s1, %s107
    %v109 = vld [vmem:[%s108] sm:$0xff]
    %v110 = vld [vmem:[%s108 + $0x8] sm:$0xff]
    %vm111 = vcmask 523264
    %112 = vst.msk [vmem:[#allocation2 + $0x20] sm:$0xff] %vm111, %v109
    %113 = vst.msk [vmem:[#allocation2 + $0x30] sm:$0xff] %vm111, %v110
  $region33: #{ang_embed.1} parent=0 // pred_fallthru
    _
  // Predicated region
  $region34: #{ang_embed.1} parent=0 // pred_check
    %p114 = pneg %p45
  $region35: #{ang_embed.1} parent=0 // pred_check_branch
    %116 = sbr.rel (%p114) target = $region37
  $region36: #{ang_embed.1} parent=0 // pred_region
    %vm117 = vcmask 516096
    %118 = vst.msk [vmem:[#allocation2 + $0x20] sm:$0x1] %vm117, 0.0
    %s119 = scalar_lea.vmem %s1, 16
    %v120 = vld [vmem:[%s119] sm:$0xff]
    %v121 = vld [vmem:[%s119 + $0x8] sm:$0x7f]
    %vm124 = vcmask 1040384
    %v125 = vrot.slane %v120, 7
    %v126 = vrot.slane %v121, 7
    %v127 = vsel %vm124, %v125, %v126
    %vm130 = vcmask 523265
    %131 = vst.msk [vmem:[#allocation2 + $0x20] sm:$0xfe] %vm130, %v125
    %vm132 = vcmask 523264
    %133 = vst.msk [vmem:[#allocation2 + $0x30] sm:$0xff] %vm132, %v127
  $region37: #{ang_embed.1} parent=0 // pred_fallthru
    _
  // Predicated region
  $region38: #{ang_embed.1} parent=0 // pred_check
    %p134 = pneg %p65
  $region39: #{ang_embed.1} parent=0 // pred_check_branch
    %136 = sbr.rel (%p134) target = $region41
  $region40: #{ang_embed.1} parent=0 // pred_region
    %s137 = sadd.s32 %s14, 1
    %s138 = sadd.s32 %s137, 16
    %s139 = scalar_lea.vmem %s1, %s138
    %v140 = vld [vmem:[%s139] sm:$0xff]
    %v141 = vld [vmem:[%s139 + $0x8] sm:$0xff]
    %vm142 = vcmask 523264
    %143 = vst.msk [vmem:[#allocation2 + $0x28] sm:$0xff] %vm142, %v140
    %144 = vst.msk [vmem:[#allocation2 + $0x38] sm:$0xff] %vm142, %v141
  $region41: #{ang_embed.1} parent=0 // pred_fallthru
    _
  // Predicated region
  $region42: #{ang_embed.1} parent=0 // pred_check
    %p145 = pneg %p45
  $region43: #{ang_embed.1} parent=0 // pred_check_branch
    %147 = sbr.rel (%p145) target = $region45
  $region44: #{ang_embed.1} parent=0 // pred_region
    %s148 = sadd.s32 %s14, 1
    %s149 = sadd.s32 %s148, 16
    %s150 = scalar_lea.vmem %s1, %s149
    %v151 = vld [vmem:[%s150] sm:$0xff]
    %v152 = vld [vmem:[%s150 + $0x8] sm:$0x7f]
    %vm153 = vcmask 523264
    %154 = vst.msk [vmem:[#allocation2 + $0x28] sm:$0xff] %vm153, %v151
    %vm155 = vcmask 522240
    %156 = vst.msk [vmem:[#allocation2 + $0x38] sm:$0x7f] %vm155, %v152
    %vm157 = vcmask 516096
    %158 = vst.msk [vmem:[#allocation2 + $0x3f] sm:$0x1] %vm157, 0.0
  $region45: #{ang_embed.1} parent=0 // pred_fallthru
    _
  %v159 = vld [vmem:[#allocation2] sm:$0xff]
  %v160 = vld [vmem:[#allocation2 + $0x8] sm:$0xff]
  %v161 = vld [vmem:[#allocation2 + $0x10] sm:$0xff]
  %v162 = vld [vmem:[#allocation2 + $0x18] sm:$0xff]
  %v163 = vld [vmem:[#allocation2 + $0x20] sm:$0xff]
  %v164 = vld [vmem:[#allocation2 + $0x28] sm:$0xff]
  %v165 = vld [vmem:[#allocation2 + $0x30] sm:$0xff]
  %v166 = vld [vmem:[#allocation2 + $0x38] sm:$0xff]
  %v167 = vld [vmem:[%s2] sm:$0xff]
  %v168 = vld [vmem:[%s2 + $0x8] sm:$0xff]
  %v169 = vld [vmem:[%s2 + $0x10] sm:$0xff]
  %v170 = vld [vmem:[%s2 + $0x18] sm:$0xff]
  %v171 = vld [vmem:[%s2 + $0x20] sm:$0xff]
  %v172 = vld [vmem:[%s2 + $0x28] sm:$0xff]
  %v173 = vld [vmem:[%s2 + $0x30] sm:$0xff]
  %v174 = vld [vmem:[%s2 + $0x38] sm:$0xff]
  %v175 = vld [vmem:[%s2 + $0x40] sm:$0xff]
  %v176 = vld [vmem:[%s2 + $0x48] sm:$0xff]
  %v177 = vld [vmem:[%s2 + $0x50] sm:$0xff]
  %v178 = vld [vmem:[%s2 + $0x58] sm:$0xff]
  %v179 = vld [vmem:[%s2 + $0x60] sm:$0xff]
  %v180 = vld [vmem:[%s2 + $0x68] sm:$0xff]
  %v181 = vld [vmem:[%s2 + $0x70] sm:$0xff]
  %v182 = vld [vmem:[%s2 + $0x78] sm:$0xff]
  %v183 = vld [vmem:[%s2 + $0x80] sm:$0xff]
  %v184 = vld [vmem:[%s2 + $0x88] sm:$0xff]
  %v185 = vld [vmem:[%s2 + $0x90] sm:$0xff]
  %v186 = vld [vmem:[%s2 + $0x98] sm:$0xff]
  %v187 = vld [vmem:[%s2 + $0xa0] sm:$0xff]
  %v188 = vld [vmem:[%s2 + $0xa8] sm:$0xff]
  %v189 = vld [vmem:[%s2 + $0xb0] sm:$0xff]
  %v190 = vld [vmem:[%s2 + $0xb8] sm:$0xff]
  %v191 = vld [vmem:[%s2 + $0xc0] sm:$0xff]
  %v192 = vld [vmem:[%s2 + $0xc8] sm:$0xff]
  %v193 = vld [vmem:[%s2 + $0xd0] sm:$0xff]
  %v194 = vld [vmem:[%s2 + $0xd8] sm:$0xff]
  %v195 = vld [vmem:[%s2 + $0xe0] sm:$0xff]
  %v196 = vld [vmem:[%s2 + $0xe8] sm:$0xff]
  %v197 = vld [vmem:[%s2 + $0xf0] sm:$0xff]
  %v198 = vld [vmem:[%s2 + $0xf8] sm:$0xff]
  %v199 = vld [vmem:[%s2 + $0x100] sm:$0xff]
  %v200 = vld [vmem:[%s2 + $0x108] sm:$0xff]
  %v201 = vld [vmem:[%s2 + $0x110] sm:$0xff]
  %v202 = vld [vmem:[%s2 + $0x118] sm:$0xff]
  %v203 = vld [vmem:[%s2 + $0x120] sm:$0xff]
  %v204 = vld [vmem:[%s2 + $0x128] sm:$0xff]
  %v205 = vld [vmem:[%s2 + $0x130] sm:$0xff]
  %v206 = vld [vmem:[%s2 + $0x138] sm:$0xff]
  %v207 = vld [vmem:[%s2 + $0x140] sm:$0xff]
  %v208 = vld [vmem:[%s2 + $0x148] sm:$0xff]
  %v209 = vld [vmem:[%s2 + $0x150] sm:$0xff]
  %v210 = vld [vmem:[%s2 + $0x158] sm:$0xff]
  %v211 = vld [vmem:[%s2 + $0x160] sm:$0xff]
  %v212 = vld [vmem:[%s2 + $0x168] sm:$0xff]
  %v213 = vld [vmem:[%s2 + $0x170] sm:$0xff]
  %v214 = vld [vmem:[%s2 + $0x178] sm:$0xff]
  %v215 = vld [vmem:[%s2 + $0x180] sm:$0x1]
  %v216 = vld [vmem:[%s2 + $0x188] sm:$0x1]
  %vm217 = vcmask 531456
  %v219 = vsel %vm217, %v160, 0
  %v222 = vsel %vm217, %v162, 0
  %v225 = vsel %vm217, %v164, 0
  %v228 = vsel %vm217, %v166, 0
  %vm230 = vcmask 1040384
  %v232 = vsel %vm230, %v215, 0
  %v235 = vsel %vm230, %v216, 0
  %237 = vmatprep.subr.mxu0 %v168
  %238 = vmatpush1.msra.mxu0 %v167
  %239 = vmatprep.subr.mxu0 %v170
  %240 = vmatpush1.msra.mxu0 %v169
  %241 = vmatprep.subr.mxu0 %v172
  %242 = vmatpush1.msra.mxu0 %v171
  %243 = vmatprep.subr.mxu0 %v174
  %244 = vmatpush1.msra.mxu0 %v173
  %245 = vmatprep.subr.mxu0 %v176
  %246 = vmatpush1.msra.mxu0 %v175
  %247 = vmatprep.subr.mxu0 %v178
  %248 = vmatpush1.msra.mxu0 %v177
  %249 = vmatprep.subr.mxu0 %v180
  %250 = vmatpush1.msra.mxu0 %v179
  %251 = vmatprep.subr.mxu0 %v182
  %252 = vmatpush1.msra.mxu0 %v181
  %253 = vmatprep.subr.mxu0 %v184
  %254 = vmatpush1.msra.mxu0 %v183
  %255 = vmatprep.subr.mxu0 %v186
  %256 = vmatpush1.msra.mxu0 %v185
  %257 = vmatprep.subr.mxu0 %v188
  %258 = vmatpush1.msra.mxu0 %v187
  %259 = vmatprep.subr.mxu0 %v190
  %260 = vmatpush1.msra.mxu0 %v189
  %261 = vmatprep.subr.mxu0 %v192
  %262 = vmatpush1.msra.mxu0 %v191
  %263 = vmatprep.subr.mxu0 %v194
  %264 = vmatpush1.msra.mxu0 %v193
  %265 = vmatprep.subr.mxu0 %v196
  %266 = vmatpush1.msra.mxu0 %v195
  %267 = vmatprep.subr.mxu0 %v198
  %268 = vmatpush1.msra.mxu0 %v197
  %269 = vmatprep.subr.mxu0 %v200
  %270 = vmatpush1.msra.mxu0 %v199
  %271 = vmatprep.subr.mxu0 %v202
  %272 = vmatpush1.msra.mxu0 %v201
  %273 = vmatprep.subr.mxu0 %v204
  %274 = vmatpush1.msra.mxu0 %v203
  %275 = vmatprep.subr.mxu0 %v206
  %276 = vmatpush1.msra.mxu0 %v205
  %277 = vmatprep.subr.mxu0 %v208
  %278 = vmatpush1.msra.mxu0 %v207
  %279 = vmatprep.subr.mxu0 %v210
  %280 = vmatpush1.msra.mxu0 %v209
  %281 = vmatprep.subr.mxu0 %v212
  %282 = vmatpush1.msra.mxu0 %v211
  %283 = vmatprep.subr.mxu0 %v214
  %284 = vmatpush1.msra.mxu0 %v213
  %285 = vmatprep.subr.mxu0 %v235
  %286 = vmatpush1.msra.mxu0 %v232
  %287 = vmatprep.subr.mxu0 0.0
  %288 = vmatpush1.msra.mxu0 0.0
  %289 = vmatprep.subr.mxu0 0.0
  %290 = vmatpush1.msra.mxu0 0.0
  %291 = vmatprep.subr.mxu0 0.0
  %292 = vmatpush1.msra.mxu0 0.0
  %293 = vmatprep.subr.mxu0 0.0
  %294 = vmatpush1.msra.mxu0 0.0
  %295 = vmatprep.subr.mxu0 0.0
  %296 = vmatpush1.msra.mxu0 0.0
  %297 = vmatprep.subr.mxu0 0.0
  %298 = vmatpush1.msra.mxu0 0.0
  %299 = vmatprep.subr.mxu0 0.0
  %300 = vmatpush1.msra.mxu0 0.0
  %301 = vmatprep.mubr.f32.mxu0 %v219
  %302 = vmatmul.mubr.f32.gmra.mrb[0].mxu0 %v159
  %v303 = vpop.f32.mrb[0].mxu0
  %v304 = vadd.f32 0.0, %v303
  %v305 = vpop.f32.mrb[0].mxu0
  %v306 = vadd.f32 0.0, %v305
  %307 = vmatprep.mubr.f32.mxu0 %v222
  %308 = vmatmul.mubr.f32.gmra.mrb[0].mxu0 %v161
  %v309 = vpop.f32.mrb[0].mxu0
  %v310 = vadd.f32 0.0, %v309
  %v311 = vpop.f32.mrb[0].mxu0
  %v312 = vadd.f32 0.0, %v311
  %313 = vmatprep.mubr.f32.mxu0 %v225
  %314 = vmatmul.mubr.f32.gmra.mrb[0].mxu0 %v163
  %v315 = vpop.f32.mrb[0].mxu0
  %v316 = vadd.f32 0.0, %v315
  %v317 = vpop.f32.mrb[0].mxu0
  %v318 = vadd.f32 0.0, %v317
  %319 = vmatprep.mubr.f32.mxu0 %v228
  %320 = vmatmul.mubr.f32.gmra.mrb[0].mxu0 %v165
  %v321 = vpop.f32.mrb[0].mxu0
  %v322 = vadd.f32 0.0, %v321
  %v323 = vpop.f32.mrb[0].mxu0
  %v324 = vadd.f32 0.0, %v323
  %325 = vdwg.mxu0
  %v326 = vld [vmem:[%s0] sm:$0xff]
  %v327 = vld [vmem:[%s0 + $0x8] sm:$0xff]
  %v328 = vld [vmem:[%s0 + $0x10] sm:$0xff]
  %v329 = vld [vmem:[%s0 + $0x18] sm:$0xff]
  %v330 = vmul.f32 %v326, %v304
  %v331 = vmul.f32 %v327, %v310
  %v332 = vmul.f32 %v328, %v316
  %v333 = vmul.f32 %v329, %v322
  %v334 = vadd.f32 %v330, %v306
  %v335 = vadd.f32 %v331, %v312
  %v336 = vadd.f32 %v332, %v318
  %v337 = vadd.f32 %v333, %v324
  %338 = vst [vmem:[%s3] sm:$0xff] %v334
  %339 = vst [vmem:[%s3 + $0x8] sm:$0xff] %v335
  %340 = vst [vmem:[%s3 + $0x10] sm:$0xff] %v336
  %341 = vst [vmem:[%s3 + $0x18] sm:$0xff] %v337
  // Predicated region
  $region46: #{ang_embed.1} parent=0 // pred_check
    _
  $region47: #{ang_embed.1} parent=0 // pred_check_branch
    %343 = sbr.rel (0) target = $region49
  $region48: #{ang_embed.1} parent=0 // pred_region
    _
  $region49: #{ang_embed.1} parent=0 // pred_fallthru
    _
  // Predicated region
  $region50: #{ang_embed.1} parent=0 // pred_check
    _
  $region51: #{ang_embed.1} parent=0 // pred_check_branch
    %345 = sbr.rel (0) target = $region53
  $region52: #{ang_embed.1} parent=0 // pred_region
    _
  $region53: #{ang_embed.1} parent=0 // pred_fallthru
    _

</llo_original>
